<compile_context>
chip_gen: v6e
topology: v6e:2x2x1
jax: 0.10.0
libtpu: 0.0.40
codegen_flags: <defaults>
</compile_context>

<pallas_src>
import jax
import jax.numpy as jnp
from jax.experimental import pallas as pl
from jax.experimental.pallas import tpu as pltpu


def _round_up(x, m):
    return (x + m - 1) // m * m


# ---------------------------------------------------------------------------
# Kernel A: fused base GEMM over the whole batch.
#   out[m, :] = x_flat[m, :] @ W0 + bias          for every row m of B*N
# Grid tiles rows x out-features; the feature axis is the last (fastest) grid
# axis so the x row-block is re-used (DMA skipped) across it.  x / W0 arrive
# as bf16 and are widened to f32 in VMEM before the dot (see header).
# ---------------------------------------------------------------------------
def _base_gemm_kernel(x_ref, w0_ref, b_ref, o_ref):
    x = x_ref[...].astype(jnp.float32)
    w = w0_ref[...].astype(jnp.float32)
    o_ref[...] = (
        jnp.dot(x, w, preferred_element_type=jnp.float32) + b_ref[...]
    ).astype(o_ref.dtype)


# ---------------------------------------------------------------------------
# Kernel B: batch-0 Chebyshev (K=2) correction, accumulated in place:
#   out[0:N, :] += (prop @ x0) @ W1
# prop's column dim is a reduction grid axis (last, "arbitrary") with an f32
# VMEM accumulator, bounding the prop VMEM footprint to (tr, tk) regardless of
# N.  The t1 @ W1 matmul + base add run only on the last reduction step; the
# output aliases `base`, so rows outside batch 0 are left untouched in HBM.
# ---------------------------------------------------------------------------
def _corr_kernel(prop_ref, x0_ref, w1_ref, base_ref, o_ref, acc_ref):
    k = pl.program_id(1)

    @pl.when(k == 0)
    def _():
        acc_ref[...] = jnp.zeros_like(acc_ref)

    acc_ref[...] += jnp.dot(
        prop_ref[...].astype(jnp.float32),
        x0_ref[...].astype(jnp.float32),
        preferred_element_type=jnp.float32,
    )

    @pl.when(k == pl.num_programs(1) - 1)
    def _():
        corr = jnp.dot(
            acc_ref[...],
            w1_ref[...].astype(jnp.float32),
            preferred_element_type=jnp.float32,
        )
        o_ref[...] = (base_ref[...] + corr).astype(o_ref.dtype)


def _prop_matrix(adj):
    """Dense propagation matrix of ChebConv's message passing: -(D^-1/2 A D^-1/2)^T."""
    deg = jnp.sum(adj, axis=1)
    dinv = jnp.where(deg > 0, jax.lax.rsqrt(deg), 0.0)
    return -(dinv[:, None] * adj * dinv[None, :]).T


def _choose_row_tile(rows, cap=2048):
    """(tile, padded_rows): prefer a tile that divides `rows` so no pad/slice."""
    if rows <= cap:
        return rows, rows                    # single full-extent block: always legal
    for tm in range(cap, 7, -8):             # multiples of 8
        if rows % tm == 0:
            return tm, rows
    return cap, _round_up(rows, cap)


@jax.jit
def cheb_gcn_forward(data, adj, w0, w1, bias):
    B, N, Fin = data.shape
    Fout = w0.shape[1]
    M = B * N

    # ---- glue (convert_adj_sparse + get_laplacian('sym') + lambda_max=2.0) ----
    # TODO(synk): the scipy COO conversion has no Pallas equivalent; the dense
    # propagation matrix is built with plain jnp here.
    prop = _prop_matrix(adj)

    # ---- output feature axis: lane-dense only when it pays off ---------------
    Fp = Fout if Fout <= 128 else _round_up(Fout, 128)
    pad_f = Fp - Fout

    # ---- tile selection -------------------------------------------------------
    tr = min(256, _round_up(N, 8))           # correction row tile
    Nr = _round_up(N, tr)                    # padded prop rows (covers batch-0 rows)
    tk = min(512, _round_up(N, 128))         # correction reduction (column) tile
    Nk = _round_up(N, tk)                    # padded prop cols / x0 rows

    rows_needed = max(M, Nr)
    tm, rows = _choose_row_tile(rows_needed)  # base-GEMM row tile / padded rows
    if Fp <= 512:
        tn = Fp
    elif Fp % 512 == 0:
        tn = 512
    elif Fp % 256 == 0:
        tn = 256
    else:
        tn = 128

    # ---- operand prep (bf16 storage halves the big HBM reads) ----------------
    x_flat = data.reshape(M, Fin).astype(jnp.bfloat16)
    if rows != M:
        x_flat = jnp.pad(x_flat, ((0, rows - M), (0, 0)))
    w0p = jnp.pad(w0, ((0, 0), (0, pad_f))).astype(jnp.bfloat16)
    w1p = jnp.pad(w1, ((0, 0), (0, pad_f))).astype(jnp.bfloat16)
    biasp = jnp.pad(bias, (0, pad_f)).reshape(1, Fp)

    prop_p = jnp.pad(prop, ((0, Nr - N), (0, Nk - N))).astype(jnp.bfloat16)
    x0_p = jnp.pad(data[0], ((0, Nk - N), (0, 0))).astype(jnp.bfloat16)

    # ---- kernel A: base GEMM over all B*N rows --------------------------------
    # (tiles sized to fit the default scoped VMEM limit on v5e/v6e/v7x; no
    #  hard-coded vmem_limit_bytes)
    base = pl.pallas_call(
        _base_gemm_kernel,
        out_shape=jax.ShapeDtypeStruct((rows, Fp), data.dtype),
        grid=(rows // tm, Fp // tn),          # feature axis last -> fastest
        in_specs=[
            pl.BlockSpec((tm, Fin), lambda i, j: (i, 0)),   # x rows (bf16)
            pl.BlockSpec((Fin, tn), lambda i, j: (0, j)),   # W0 (bf16)
            pl.BlockSpec((1, tn), lambda i, j: (0, j)),     # bias (f32)
        ],
        out_specs=pl.BlockSpec((tm, tn), lambda i, j: (i, j)),
        compiler_params=pltpu.CompilerParams(
            dimension_semantics=("parallel", "parallel")),
    )(x_flat, w0p, biasp)

    # ---- kernel B: batch-0 correction, accumulated in place (aliases `base`) --
    out_full = pl.pallas_call(
        _corr_kernel,
        out_shape=jax.ShapeDtypeStruct((rows, Fp), data.dtype),
        grid=(Nr // tr, Nk // tk),            # reduction axis last ("arbitrary")
        in_specs=[
            pl.BlockSpec((tr, tk), lambda i, k: (i, k)),    # prop tile (bf16)
            pl.BlockSpec((tk, Fin), lambda i, k: (k, 0)),   # x0 tile (bf16)
            pl.BlockSpec((Fin, Fp), lambda i, k: (0, 0)),   # W1 (constant)
            pl.BlockSpec((tr, Fp), lambda i, k: (i, 0)),    # existing base rows
        ],
        out_specs=pl.BlockSpec((tr, Fp), lambda i, k: (i, 0)),
        scratch_shapes=[pltpu.VMEM((tr, Fin), jnp.float32)],
        input_output_aliases={3: 0},          # output aliases `base` (in-place add)
        compiler_params=pltpu.CompilerParams(
            dimension_semantics=("parallel", "arbitrary")),
    )(prop_p, x0_p, w1p, base)

    out = out_full
    if rows != M:
        out = out[:M]
    if pad_f:
        out = out[:, :Fout]
    return out.reshape(B, N, Fout)


# ---------------------------------------------------------------------------
# Pure-JAX references.
# ---------------------------------------------------------------------------
_HI = jax.lax.Precision.HIGHEST


def ref_forward(data, adj, w0, w1, bias):
    """Full-f32 reference of the exact PyTorch forward semantics."""
    prop = _prop_matrix(adj)
    out = jnp.einsum("bnf,fo->bno", data, w0, precision=_HI) + bias[None, None, :]
    t1 = jnp.dot(prop, data[0], precision=_HI)
    return out.at[0].add(jnp.dot(t1, w1, precision=_HI))


def ref_forward_matched(data, adj, w0, w1, bias):
    """Same math with the kernel's bf16 operand rounding (all dots in f32)."""
    rt = lambda a: a.astype(jnp.bfloat16).astype(jnp.float32)
    xb, w0b, w1b = rt(data), rt(w0), rt(w1)
    propb = rt(_prop_matrix(adj))
    out = jnp.einsum("bnf,fo->bno", xb, w0b, precision=_HI) + bias[None, None, :]
    t1 = jnp.dot(propb, xb[0], precision=_HI)
    return out.at[0].add(jnp.dot(t1, w1b, precision=_HI))


if __name__ == "__main__":
    key = jax.random.PRNGKey(0)
    kd, ka, k0, k1, kb = jax.random.split(key, 5)

    B, N, Fin, Fout = 2, 16, 8, 32      # batch, num_nodes, in_features, out_features

    data = jax.random.normal(kd, (B, N, Fin), dtype=jnp.float32)
    mask = (jax.random.uniform(ka, (N, N)) > 0.5).astype(jnp.float32)
    adj = mask * (1.0 - jnp.eye(N, dtype=jnp.float32))   # sparse-ish, no self loops

    # ChebConv params: lins[k] = Linear(Fin, Fout, bias=False), plus bias(Fout)
    w0 = 0.1 * jax.random.normal(k0, (Fin, Fout), dtype=jnp.float32)
    w1 = 0.1 * jax.random.normal(k1, (Fin, Fout), dtype=jnp.float32)
    bias = 0.1 * jax.random.normal(kb, (Fout,), dtype=jnp.float32)

    out = jax.block_until_ready(cheb_gcn_forward(data, adj, w0, w1, bias))

    ref_mt = ref_forward_matched(data, adj, w0, w1, bias)
    ref_hi = ref_forward(data, adj, w0, w1, bias)

    assert out.shape == (B, N, Fout), out.shape
    # tight check vs the reference matching the kernel's bf16 operand rounding
    err_mt = float(jnp.max(jnp.abs(out - ref_mt)))
    assert jnp.allclose(out, ref_mt, atol=2e-3, rtol=2e-3), err_mt
    # looser check vs full-f32 math (bf16 operand rounding is the only difference)
    err_hi = float(jnp.max(jnp.abs(out - ref_hi)))
    assert jnp.allclose(out, ref_hi, atol=5e-2, rtol=5e-2), err_hi
    print("KERNEL_OK")
</pallas_src>

<mosaic_0001>
module attributes {stable_mosaic.version = 11 : i64} {
  func.func @_base_gemm_kernel(%arg0: i32, %arg1: i32, %arg2: memref<32x8xbf16, #tpu.memory_space<vmem>>, %arg3: memref<8x32xbf16, #tpu.memory_space<vmem>>, %arg4: memref<1x32xf32, #tpu.memory_space<vmem>>, %arg5: memref<32x32xf32, #tpu.memory_space<vmem>>) attributes {dimension_semantics = [#tpu.dimension_semantics<parallel>, #tpu.dimension_semantics<parallel>], iteration_bounds = array<i64: 1, 1>, scalar_prefetch = 0 : i64, scratch_operands = 0 : i64, tpu.core_type = #tpu.core_type<tc>, window_params = [{transform_indices = @transform_0, window_bounds = array<i64: 32, 8>}, {transform_indices = @transform_1, window_bounds = array<i64: 8, 32>}, {transform_indices = @transform_2, window_bounds = array<i64: 1, 32>}, {transform_indices = @transform_3, window_bounds = array<i64: 32, 32>}]} {
    %c0 = arith.constant 0 : index
    %c0_0 = arith.constant 0 : index
    %0 = vector.load %arg2[%c0, %c0_0] : memref<32x8xbf16, #tpu.memory_space<vmem>>, vector<32x8xbf16>
    %1 = arith.extf %0 : vector<32x8xbf16> to vector<32x8xf32>
    %c0_1 = arith.constant 0 : index
    %c0_2 = arith.constant 0 : index
    %2 = vector.load %arg3[%c0_1, %c0_2] : memref<8x32xbf16, #tpu.memory_space<vmem>>, vector<8x32xbf16>
    %3 = arith.extf %2 : vector<8x32xbf16> to vector<8x32xf32>
    %cst = arith.constant dense<0.000000e+00> : vector<32x32xf32>
    %4 = tpu.matmul %1, %3, %cst {dimension_numbers = #tpu.dot_dimension_numbers<[1], [0], [0], [1], [0, 0, 1, 1], [], []>} : vector<32x8xf32>, vector<8x32xf32>, vector<32x32xf32> -> vector<32x32xf32>
    %c0_3 = arith.constant 0 : index
    %c0_4 = arith.constant 0 : index
    %5 = vector.load %arg4[%c0_3, %c0_4] : memref<1x32xf32, #tpu.memory_space<vmem>>, vector<1x32xf32>
    %6 = vector.broadcast %5 : vector<1x32xf32> to vector<32x32xf32>
    %7 = arith.addf %4, %6 : vector<32x32xf32>
    %c0_5 = arith.constant 0 : index
    %c0_6 = arith.constant 0 : index
    %8 = vector.load %arg5[%c0_5, %c0_6] : memref<32x32xf32, #tpu.memory_space<vmem>>, vector<32x32xf32>
    tpu.vector_store %arg5[%c0_5, %c0_6], %7 {strides = array<i32>} : memref<32x32xf32, #tpu.memory_space<vmem>>, vector<32x32xf32>,
    return
  }
  func.func @transform_0(%arg0: i32, %arg1: i32) -> (i32, i32) {
    %c0_i32 = arith.constant 0 : i32
    %c0_i32_0 = arith.constant 0 : i32
    return %arg0, %c0_i32 : i32, i32
  }
  func.func @transform_1(%arg0: i32, %arg1: i32) -> (i32, i32) {
    %c0_i32 = arith.constant 0 : i32
    %c0_i32_0 = arith.constant 0 : i32
    return %c0_i32, %arg1 : i32, i32
  }
  func.func @transform_2(%arg0: i32, %arg1: i32) -> (i32, i32) {
    %c0_i32 = arith.constant 0 : i32
    %c0_i32_0 = arith.constant 0 : i32
    return %c0_i32, %arg1 : i32, i32
  }
  func.func @transform_3(%arg0: i32, %arg1: i32) -> (i32, i32) {
    %c0_i32 = arith.constant 0 : i32
    return %arg0, %arg1 : i32, i32
  }
}

module attributes {stable_mosaic.version = 11 : i64} {
  func.func @_corr_kernel(%arg0: i32, %arg1: i32, %arg2: memref<16x128xbf16, #tpu.memory_space<vmem>>, %arg3: memref<128x8xbf16, #tpu.memory_space<vmem>>, %arg4: memref<8x32xbf16, #tpu.memory_space<vmem>>, %arg5: memref<16x32xf32, #tpu.memory_space<vmem>>, %arg6: memref<16x32xf32, #tpu.memory_space<vmem>>, %arg7: memref<16x8xf32, #tpu.memory_space<vmem>>) attributes {dimension_semantics = [#tpu.dimension_semantics<parallel>, #tpu.dimension_semantics<arbitrary>], iteration_bounds = array<i64: 1, 1>, scalar_prefetch = 0 : i64, scratch_operands = 1 : i64, tpu.core_type = #tpu.core_type<tc>, window_params = [{transform_indices = @transform_0, window_bounds = array<i64: 16, 128>}, {transform_indices = @transform_1, window_bounds = array<i64: 128, 8>}, {pipeline_mode = #tpu.pipeline_mode<synchronous>, transform_indices = @transform_2, window_bounds = array<i64: 8, 32>}, {transform_indices = @transform_3, window_bounds = array<i64: 16, 32>}, {transform_indices = @transform_4, window_bounds = array<i64: 16, 32>}]} {
    %c0_i32 = arith.constant 0 : i32
    %0 = arith.cmpi eq, %arg1, %c0_i32 : i32
    %1 = arith.extui %0 : i1 to i32
    %c0_i32_0 = arith.constant 0 : i32
    %2 = arith.cmpi ne, %1, %c0_i32_0 : i32
    scf.if %2 {
      %cst_10 = arith.constant 0.000000e+00 : f32
      %14 = vector.broadcast %cst_10 : f32 to vector<16x8xf32>
      %c0_11 = arith.constant 0 : index
      %c0_12 = arith.constant 0 : index
      %15 = vector.load %arg7[%c0_11, %c0_12] : memref<16x8xf32, #tpu.memory_space<vmem>>, vector<16x8xf32>
      tpu.vector_store %arg7[%c0_11, %c0_12], %14 {strides = array<i32>} : memref<16x8xf32, #tpu.memory_space<vmem>>, vector<16x8xf32>,
    } else {
    }
    %c0 = arith.constant 0 : index
    %c0_1 = arith.constant 0 : index
    %3 = vector.load %arg7[%c0, %c0_1] : memref<16x8xf32, #tpu.memory_space<vmem>>, vector<16x8xf32>
    %c0_2 = arith.constant 0 : index
    %c0_3 = arith.constant 0 : index
    %4 = vector.load %arg2[%c0_2, %c0_3] : memref<16x128xbf16, #tpu.memory_space<vmem>>, vector<16x128xbf16>
    %5 = arith.extf %4 : vector<16x128xbf16> to vector<16x128xf32>
    %c0_4 = arith.constant 0 : index
    %c0_5 = arith.constant 0 : index
    %6 = vector.load %arg3[%c0_4, %c0_5] : memref<128x8xbf16, #tpu.memory_space<vmem>>, vector<128x8xbf16>
    %7 = arith.extf %6 : vector<128x8xbf16> to vector<128x8xf32>
    %cst = arith.constant dense<0.000000e+00> : vector<16x8xf32>
    %8 = tpu.matmul %5, %7, %cst {dimension_numbers = #tpu.dot_dimension_numbers<[1], [0], [0], [1], [0, 0, 1, 1], [], []>} : vector<16x128xf32>, vector<128x8xf32>, vector<16x8xf32> -> vector<16x8xf32>
    %9 = arith.addf %3, %8 : vector<16x8xf32>
    %c0_6 = arith.constant 0 : index
    %c0_7 = arith.constant 0 : index
    %10 = vector.load %arg7[%c0_6, %c0_7] : memref<16x8xf32, #tpu.memory_space<vmem>>, vector<16x8xf32>
    tpu.vector_store %arg7[%c0_6, %c0_7], %9 {strides = array<i32>} : memref<16x8xf32, #tpu.memory_space<vmem>>, vector<16x8xf32>,
    %c0_i32_8 = arith.constant 0 : i32
    %11 = arith.cmpi eq, %arg1, %c0_i32_8 : i32
    %12 = arith.extui %11 : i1 to i32
    %c0_i32_9 = arith.constant 0 : i32
    %13 = arith.cmpi ne, %12, %c0_i32_9 : i32
    scf.if %13 {
      %c0_10 = arith.constant 0 : index
      %c0_11 = arith.constant 0 : index
      %14 = vector.load %arg7[%c0_10, %c0_11] : memref<16x8xf32, #tpu.memory_space<vmem>>, vector<16x8xf32>
      %c0_12 = arith.constant 0 : index
      %c0_13 = arith.constant 0 : index
      %15 = vector.load %arg4[%c0_12, %c0_13] : memref<8x32xbf16, #tpu.memory_space<vmem>>, vector<8x32xbf16>
      %16 = arith.extf %15 : vector<8x32xbf16> to vector<8x32xf32>
      %cst_14 = arith.constant dense<0.000000e+00> : vector<16x32xf32>
      %17 = tpu.matmul %14, %16, %cst_14 {dimension_numbers = #tpu.dot_dimension_numbers<[1], [0], [0], [1], [0, 0, 1, 1], [], []>} : vector<16x8xf32>, vector<8x32xf32>, vector<16x32xf32> -> vector<16x32xf32>
      %c0_15 = arith.constant 0 : index
      %c0_16 = arith.constant 0 : index
      %18 = vector.load %arg5[%c0_15, %c0_16] : memref<16x32xf32, #tpu.memory_space<vmem>>, vector<16x32xf32>
      %19 = arith.addf %18, %17 : vector<16x32xf32>
      %c0_17 = arith.constant 0 : index
      %c0_18 = arith.constant 0 : index
      %20 = vector.load %arg6[%c0_17, %c0_18] : memref<16x32xf32, #tpu.memory_space<vmem>>, vector<16x32xf32>
      tpu.vector_store %arg6[%c0_17, %c0_18], %19 {strides = array<i32>} : memref<16x32xf32, #tpu.memory_space<vmem>>, vector<16x32xf32>,
    } else {
    }
    return
  }
  func.func @transform_0(%arg0: i32, %arg1: i32) -> (i32, i32) {
    %c0_i32 = arith.constant 0 : i32
    return %arg0, %arg1 : i32, i32
  }
  func.func @transform_1(%arg0: i32, %arg1: i32) -> (i32, i32) {
    %c0_i32 = arith.constant 0 : i32
    %c0_i32_0 = arith.constant 0 : i32
    return %arg1, %c0_i32 : i32, i32
  }
  func.func @transform_2(%arg0: i32, %arg1: i32) -> (i32, i32) {
    %c0_i32 = arith.constant 0 : i32
    %c0_i32_0 = arith.constant 0 : i32
    %c0_i32_1 = arith.constant 0 : i32
    return %c0_i32, %c0_i32_0 : i32, i32
  }
  func.func @transform_3(%arg0: i32, %arg1: i32) -> (i32, i32) {
    %c0_i32 = arith.constant 0 : i32
    %c0_i32_0 = arith.constant 0 : i32
    return %arg0, %c0_i32 : i32, i32
  }
  func.func @transform_4(%arg0: i32, %arg1: i32) -> (i32, i32) {
    %c0_i32 = arith.constant 0 : i32
    %c0_i32_0 = arith.constant 0 : i32
    return %arg0, %c0_i32 : i32, i32
  }
}

</mosaic_0001>

<llo_original>
// kernel: cheb_gcn_forward.2
$region0: #{cheb_gcn_forward.2}
  #allocation0 [shape = 'u32[]', space=smem, size = 0x4, offset = 0x4, fixed_abs, tag = 'smem constant byte address 0x4 - core index']
  #allocation1 [shape = 'u32[144,128]{1,0:T(1,128)}', space=vmem, size = 0x12000, scoped, tag = 'internal scratch']
  %s0 = inlined_call_operand.vmem [shape: bf16[32,8], index: 0, kind: input, shape index: {}]
  %s1 = inlined_call_operand.vmem [shape: bf16[8,32], index: 1, kind: input, shape index: {}]
  %s2 = inlined_call_operand.vmem [shape: f32[1,32], index: 2, kind: input, shape index: {}]
  %s3 = inlined_call_operand.vmem [shape: f32[32,32], index: 3, kind: output, shape index: {}]
  %s4 = sld [smem:[#allocation0]]
  $region22: #{cheb_gcn_forward.2} parent=0
    _
  %s6 = ssub.s32 1, %s4
  %s7 = scalar_select 0, %s6, %s4
  // Predicated region
  $region2: #{cheb_gcn_forward.2} parent=0 // pred_check
    _
  $region3: #{cheb_gcn_forward.2} parent=0 // pred_check_branch
    %9 = sbr.rel (0) target = $region5
  $region4: #{cheb_gcn_forward.2} parent=0 // pred_region
    _
  $region5: #{cheb_gcn_forward.2} parent=0 // pred_fallthru
    _
  // Predicated region
  $region6: #{cheb_gcn_forward.2} parent=0 // pred_check
    _
  $region7: #{cheb_gcn_forward.2} parent=0 // pred_check_branch
    %11 = sbr.rel (0) target = $region9
  $region8: #{cheb_gcn_forward.2} parent=0 // pred_region
    _
  $region9: #{cheb_gcn_forward.2} parent=0 // pred_fallthru
    _
  // Predicated region
  $region10: #{cheb_gcn_forward.2} parent=0 // pred_check
    _
  $region11: #{cheb_gcn_forward.2} parent=0 // pred_check_branch
    %13 = sbr.rel (0) target = $region13
  $region12: #{cheb_gcn_forward.2} parent=0 // pred_region
    _
  $region13: #{cheb_gcn_forward.2} parent=0 // pred_fallthru
    _
  %v14 = vld [vmem:[%s0] sm:$0xf]
  %v15 = vld [vmem:[%s0 + $0x4] sm:$0xf]
  %v16 = vld [vmem:[%s0 + $0x8] sm:$0xf]
  %v17 = vld [vmem:[%s0 + $0xc] sm:$0xf]
  %v18 = vunpack.c.l.bf16 %v14
  %v19 = vunpack.c.l.bf16 %v15
  %v20 = vunpack.c.l.bf16 %v16
  %v21 = vunpack.c.l.bf16 %v17
  %v22 = vld [vmem:[%s1] sm:$0xf]
  %v23 = vunpack.c.l.bf16 %v22
  %v24 = vld [vmem:[%s2] sm:$0x1]
  %v26 = vlaneseq
  %v27 = vshrl.u32 %v26, 7
  %v28 = vsub.s32 0, %v27
  %v29 = vrot.slane %v24, %v28
  %vm31 = vcmask 64512
  %v33 = vsel %vm31, %v18, 0
  %v36 = vsel %vm31, %v19, 0
  %v39 = vsel %vm31, %v20, 0
  %v42 = vsel %vm31, %v21, 0
  %44 = vmatprep.subr.mxu0 0.0
  %45 = vmatpush1.msra.mxu0 0.0
  %46 = vmatprep.subr.mxu0 0.0
  %47 = vmatpush1.msra.mxu0 0.0
  %48 = vmatprep.subr.mxu0 0.0
  %49 = vmatpush1.msra.mxu0 0.0
  %50 = vmatprep.subr.mxu0 0.0
  %51 = vmatpush1.msra.mxu0 0.0
  %52 = vmatprep.subr.mxu0 0.0
  %53 = vmatpush1.msra.mxu0 0.0
  %54 = vmatprep.subr.mxu0 0.0
  %55 = vmatpush1.msra.mxu0 0.0
  %56 = vmatprep.subr.mxu0 0.0
  %57 = vmatpush1.msra.mxu0 0.0
  %58 = vmatprep.subr.mxu0 0.0
  %59 = vmatpush1.msra.mxu0 0.0
  %60 = vmatprep.subr.mxu0 0.0
  %61 = vmatpush1.msra.mxu0 0.0
  %62 = vmatprep.subr.mxu0 0.0
  %63 = vmatpush1.msra.mxu0 0.0
  %64 = vmatprep.subr.mxu0 0.0
  %65 = vmatpush1.msra.mxu0 0.0
  %66 = vmatprep.subr.mxu0 0.0
  %67 = vmatpush1.msra.mxu0 0.0
  %68 = vmatprep.subr.mxu0 0.0
  %69 = vmatpush1.msra.mxu0 0.0
  %70 = vmatprep.subr.mxu0 0.0
  %71 = vmatpush1.msra.mxu0 0.0
  %72 = vmatprep.subr.mxu0 0.0
  %73 = vmatpush1.msra.mxu0 0.0
  %74 = vmatprep.subr.mxu0 0.0
  %75 = vmatpush1.msra.mxu0 %v23
  %76 = vmatprep.subr.mxu0 0.0
  %77 = vmatpush2.msra.mxu0 0.0
  %78 = vmatprep.subr.mxu0 0.0
  %79 = vmatpush2.msra.mxu0 0.0
  %80 = vmatprep.subr.mxu0 0.0
  %81 = vmatpush2.msra.mxu0 0.0
  %82 = vmatprep.subr.mxu0 0.0
  %83 = vmatpush2.msra.mxu0 0.0
  %84 = vmatprep.subr.mxu0 0.0
  %85 = vmatpush2.msra.mxu0 0.0
  %86 = vmatprep.subr.mxu0 0.0
  %87 = vmatpush2.msra.mxu0 0.0
  %88 = vmatprep.subr.mxu0 0.0
  %89 = vmatpush2.msra.mxu0 0.0
  %90 = vmatprep.subr.mxu0 0.0
  %91 = vmatpush2.msra.mxu0 0.0
  %92 = vmatprep.subr.mxu0 0.0
  %93 = vmatpush2.msra.mxu0 0.0
  %94 = vmatprep.subr.mxu0 0.0
  %95 = vmatpush2.msra.mxu0 0.0
  %96 = vmatprep.subr.mxu0 0.0
  %97 = vmatpush2.msra.mxu0 0.0
  %98 = vmatprep.subr.mxu0 0.0
  %99 = vmatpush2.msra.mxu0 0.0
  %100 = vmatprep.subr.mxu0 0.0
  %101 = vmatpush2.msra.mxu0 0.0
  %102 = vmatprep.subr.mxu0 0.0
  %103 = vmatpush2.msra.mxu0 0.0
  %104 = vmatprep.subr.mxu0 0.0
  %105 = vmatpush2.msra.mxu0 0.0
  %106 = vmatprep.subr.mxu0 0.0
  %107 = vmatpush2.msra.mxu0 0.0
  %108 = vmatprep.mubr.f32.mxu0 0.0
  %109 = vmatmul.mubr.f32.gmra.mxu0 %v33
  %v110 = vpop.f32.mrf.mxu0
  %v111 = vadd.f32 %v29, %v110
  %v112 = vpop.f32.mrf.mxu0
  %113 = vmatprep.mubr.f32.mxu0 0.0
  %114 = vmatmul.mubr.f32.gmra.mxu0 %v36
  %v115 = vpop.f32.mrf.mxu0
  %v116 = vadd.f32 %v29, %v115
  %v117 = vpop.f32.mrf.mxu0
  %118 = vmatprep.mubr.f32.mxu0 0.0
  %119 = vmatmul.mubr.f32.gmra.mxu0 %v39
  %v120 = vpop.f32.mrf.mxu0
  %v121 = vadd.f32 %v29, %v120
  %v122 = vpop.f32.mrf.mxu0
  %123 = vmatprep.mubr.f32.mxu0 0.0
  %124 = vmatmul.mubr.f32.gmra.mxu0 %v42
  %v125 = vpop.f32.mrf.mxu0
  %v126 = vadd.f32 %v29, %v125
  %v127 = vpop.f32.mrf.mxu0
  %128 = vdwg.mxu0
  %vm129 = vcmask 261120
  %130 = vst.msk [vmem:[%s3] sm:$0xff] %vm129, %v111
  %131 = vst.msk [vmem:[%s3 + $0x8] sm:$0xff] %vm129, %v116
  %132 = vst.msk [vmem:[%s3 + $0x10] sm:$0xff] %vm129, %v121
  %133 = vst.msk [vmem:[%s3 + $0x18] sm:$0xff] %vm129, %v126
  // Predicated region
  $region14: #{cheb_gcn_forward.2} parent=0 // pred_check
    _
  $region15: #{cheb_gcn_forward.2} parent=0 // pred_check_branch
    %135 = sbr.rel (0) target = $region17
  $region16: #{cheb_gcn_forward.2} parent=0 // pred_region
    _
  $region17: #{cheb_gcn_forward.2} parent=0 // pred_fallthru
    _
  // Predicated region
  $region18: #{cheb_gcn_forward.2} parent=0 // pred_check
    _
  $region19: #{cheb_gcn_forward.2} parent=0 // pred_check_branch
    %137 = sbr.rel (0) target = $region21
  $region20: #{cheb_gcn_forward.2} parent=0 // pred_region
    _
  $region21: #{cheb_gcn_forward.2} parent=0 // pred_fallthru
    _

// kernel: cheb_gcn_forward.3
$region0: #{cheb_gcn_forward.3}
  #allocation0 [shape = 'u32[]', space=smem, size = 0x4, offset = 0x4, fixed_abs, tag = 'smem constant byte address 0x4 - core index']
  #allocation1 [shape = 'u32[144,128]{1,0:T(1,128)}', space=vmem, size = 0x12000, scoped, tag = 'internal scratch']
  #allocation2 [shape = 'f32[16,8]{1,0:T(8,128)}', space=vmem, size = 0x2000, scoped, tag = 'scratch operand']
  %s0 = inlined_call_operand.vmem [shape: bf16[16,128], index: 0, kind: input, shape index: {}]
  %s1 = inlined_call_operand.vmem [shape: bf16[128,8], index: 1, kind: input, shape index: {}]
  %s2 = inlined_call_operand.vmem [shape: bf16[8,32], index: 2, kind: input, shape index: {}]
  %s3 = inlined_call_operand.vmem [shape: f32[32,32], index: 3, kind: input, shape index: {}, may-alias: {3,4}]
  %s4 = inlined_call_operand.vmem [shape: f32[32,32], index: 4, kind: output, shape index: {}, may-alias: {3,4}]
  %s5 = sld [smem:[#allocation0]]
  $region34: #{cheb_gcn_forward.3} parent=0
    _
  %s7 = ssub.s32 1, %s5
  %s8 = scalar_select 0, %s7, %s5
  // Predicated region
  $region2: #{cheb_gcn_forward.3} parent=0 // pred_check
    _
  $region3: #{cheb_gcn_forward.3} parent=0 // pred_check_branch
    %10 = sbr.rel (0) target = $region5
  $region4: #{cheb_gcn_forward.3} parent=0 // pred_region
    _
  $region5: #{cheb_gcn_forward.3} parent=0 // pred_fallthru
    _
  // Predicated region
  $region6: #{cheb_gcn_forward.3} parent=0 // pred_check
    _
  $region7: #{cheb_gcn_forward.3} parent=0 // pred_check_branch
    %12 = sbr.rel (0) target = $region9
  $region8: #{cheb_gcn_forward.3} parent=0 // pred_region
    _
  $region9: #{cheb_gcn_forward.3} parent=0 // pred_fallthru
    _
  // Predicated region
  $region10: #{cheb_gcn_forward.3} parent=0 // pred_check
    _
  $region11: #{cheb_gcn_forward.3} parent=0 // pred_check_branch
    %14 = sbr.rel (0) target = $region13
  $region12: #{cheb_gcn_forward.3} parent=0 // pred_region
    _
  $region13: #{cheb_gcn_forward.3} parent=0 // pred_fallthru
    _
  // Predicated region
  $region14: #{cheb_gcn_forward.3} parent=0 // pred_check
    _
  $region15: #{cheb_gcn_forward.3} parent=0 // pred_check_branch
    %16 = sbr.rel (0) target = $region17
  $region16: #{cheb_gcn_forward.3} parent=0 // pred_region
    _
  $region17: #{cheb_gcn_forward.3} parent=0 // pred_fallthru
    _
  %p17 = scmp.eq.s32.totalorder 0, 0
  // Predicated region
  $region18: #{cheb_gcn_forward.3} parent=0 // pred_check
    %p18 = pneg %p17
  $region19: #{cheb_gcn_forward.3} parent=0 // pred_check_branch
    %20 = sbr.rel (%p18) target = $region21
  $region20: #{cheb_gcn_forward.3} parent=0 // pred_region
    %vm21 = vcmask 64512
    %22 = vst.msk [vmem:[#allocation2] sm:$0xff] %vm21, 0.0
    %23 = vst.msk [vmem:[#allocation2 + $0x8] sm:$0xff] %vm21, 0.0
  $region21: #{cheb_gcn_forward.3} parent=0 // pred_fallthru
    _
  %v24 = vld [vmem:[#allocation2] sm:$0xff]
  %v25 = vld [vmem:[#allocation2 + $0x8] sm:$0xff]
  %v26 = vld [vmem:[%s0] sm:$0xf]
  %v27 = vld [vmem:[%s0 + $0x4] sm:$0xf]
  %v28 = vunpack.c.l.bf16 %v26
  %v29 = vunpack.c.l.bf16 %v27
  %v30 = vld [vmem:[%s1] sm:$0xf]
  %v31 = vld [vmem:[%s1 + $0x4] sm:$0xf]
  %v32 = vld [vmem:[%s1 + $0x8] sm:$0xf]
  %v33 = vld [vmem:[%s1 + $0xc] sm:$0xf]
  %v34 = vld [vmem:[%s1 + $0x10] sm:$0xf]
  %v35 = vld [vmem:[%s1 + $0x14] sm:$0xf]
  %v36 = vld [vmem:[%s1 + $0x18] sm:$0xf]
  %v37 = vld [vmem:[%s1 + $0x1c] sm:$0xf]
  %v38 = vld [vmem:[%s1 + $0x20] sm:$0xf]
  %v39 = vld [vmem:[%s1 + $0x24] sm:$0xf]
  %v40 = vld [vmem:[%s1 + $0x28] sm:$0xf]
  %v41 = vld [vmem:[%s1 + $0x2c] sm:$0xf]
  %v42 = vld [vmem:[%s1 + $0x30] sm:$0xf]
  %v43 = vld [vmem:[%s1 + $0x34] sm:$0xf]
  %v44 = vld [vmem:[%s1 + $0x38] sm:$0xf]
  %v45 = vld [vmem:[%s1 + $0x3c] sm:$0xf]
  %v46 = vunpack.c.l.bf16 %v30
  %v47 = vunpack.c.l.bf16 %v31
  %v48 = vunpack.c.l.bf16 %v32
  %v49 = vunpack.c.l.bf16 %v33
  %v50 = vunpack.c.l.bf16 %v34
  %v51 = vunpack.c.l.bf16 %v35
  %v52 = vunpack.c.l.bf16 %v36
  %v53 = vunpack.c.l.bf16 %v37
  %v54 = vunpack.c.l.bf16 %v38
  %v55 = vunpack.c.l.bf16 %v39
  %v56 = vunpack.c.l.bf16 %v40
  %v57 = vunpack.c.l.bf16 %v41
  %v58 = vunpack.c.l.bf16 %v42
  %v59 = vunpack.c.l.bf16 %v43
  %v60 = vunpack.c.l.bf16 %v44
  %v61 = vunpack.c.l.bf16 %v45
  %62 = vmatprep.subr.mxu0 0.0
  %63 = vmatpush1.msra.mxu0 %v61
  %64 = vmatprep.subr.mxu0 0.0
  %65 = vmatpush1.msra.mxu0 %v60
  %66 = vmatprep.subr.mxu0 0.0
  %67 = vmatpush1.msra.mxu0 %v59
  %68 = vmatprep.subr.mxu0 0.0
  %69 = vmatpush1.msra.mxu0 %v58
  %70 = vmatprep.subr.mxu0 0.0
  %71 = vmatpush1.msra.mxu0 %v57
  %72 = vmatprep.subr.mxu0 0.0
  %73 = vmatpush1.msra.mxu0 %v56
  %74 = vmatprep.subr.mxu0 0.0
  %75 = vmatpush1.msra.mxu0 %v55
  %76 = vmatprep.subr.mxu0 0.0
  %77 = vmatpush1.msra.mxu0 %v54
  %78 = vmatprep.subr.mxu0 0.0
  %79 = vmatpush1.msra.mxu0 %v53
  %80 = vmatprep.subr.mxu0 0.0
  %81 = vmatpush1.msra.mxu0 %v52
  %82 = vmatprep.subr.mxu0 0.0
  %83 = vmatpush1.msra.mxu0 %v51
  %84 = vmatprep.subr.mxu0 0.0
  %85 = vmatpush1.msra.mxu0 %v50
  %86 = vmatprep.subr.mxu0 0.0
  %87 = vmatpush1.msra.mxu0 %v49
  %88 = vmatprep.subr.mxu0 0.0
  %89 = vmatpush1.msra.mxu0 %v48
  %90 = vmatprep.subr.mxu0 0.0
  %91 = vmatpush1.msra.mxu0 %v47
  %92 = vmatprep.subr.mxu0 0.0
  %93 = vmatpush1.msra.mxu0 %v46
  %94 = vmatprep.subr.mxu0 0.0
  %95 = vmatpush2.msra.mxu0 0.0
  %96 = vmatprep.subr.mxu0 0.0
  %97 = vmatpush2.msra.mxu0 0.0
  %98 = vmatprep.subr.mxu0 0.0
  %99 = vmatpush2.msra.mxu0 0.0
  %100 = vmatprep.subr.mxu0 0.0
  %101 = vmatpush2.msra.mxu0 0.0
  %102 = vmatprep.subr.mxu0 0.0
  %103 = vmatpush2.msra.mxu0 0.0
  %104 = vmatprep.subr.mxu0 0.0
  %105 = vmatpush2.msra.mxu0 0.0
  %106 = vmatprep.subr.mxu0 0.0
  %107 = vmatpush2.msra.mxu0 0.0
  %108 = vmatprep.subr.mxu0 0.0
  %109 = vmatpush2.msra.mxu0 0.0
  %110 = vmatprep.subr.mxu0 0.0
  %111 = vmatpush2.msra.mxu0 0.0
  %112 = vmatprep.subr.mxu0 0.0
  %113 = vmatpush2.msra.mxu0 0.0
  %114 = vmatprep.subr.mxu0 0.0
  %115 = vmatpush2.msra.mxu0 0.0
  %116 = vmatprep.subr.mxu0 0.0
  %117 = vmatpush2.msra.mxu0 0.0
  %118 = vmatprep.subr.mxu0 0.0
  %119 = vmatpush2.msra.mxu0 0.0
  %120 = vmatprep.subr.mxu0 0.0
  %121 = vmatpush2.msra.mxu0 0.0
  %122 = vmatprep.subr.mxu0 0.0
  %123 = vmatpush2.msra.mxu0 0.0
  %124 = vmatprep.subr.mxu0 0.0
  %125 = vmatpush2.msra.mxu0 0.0
  %126 = vmatprep.mubr.f32.mxu0 0.0
  %127 = vmatmul.mubr.f32.gmra.mxu0 %v28
  %v128 = vpop.f32.mrf.mxu0
  %v129 = vadd.f32 0.0, %v128
  %v130 = vpop.f32.mrf.mxu0
  %131 = vmatprep.mubr.f32.mxu0 0.0
  %132 = vmatmul.mubr.f32.gmra.mxu0 %v29
  %v133 = vpop.f32.mrf.mxu0
  %v134 = vadd.f32 0.0, %v133
  %v135 = vpop.f32.mrf.mxu0
  %136 = vdwg.mxu0
  %v137 = vadd.f32 %v24, %v129
  %v138 = vadd.f32 %v25, %v134
  %vm139 = vcmask 64512
  %140 = vst.msk [vmem:[#allocation2] sm:$0xff] %vm139, %v137
  %141 = vst.msk [vmem:[#allocation2 + $0x8] sm:$0xff] %vm139, %v138
  // Predicated region
  $region22: #{cheb_gcn_forward.3} parent=0 // pred_check
    %p142 = pneg %p17
  $region23: #{cheb_gcn_forward.3} parent=0 // pred_check_branch
    %144 = sbr.rel (%p142) target = $region25
  $region24: #{cheb_gcn_forward.3} parent=0 // pred_region
    %v145 = vld [vmem:[#allocation2] sm:$0xff]
    %v146 = vld [vmem:[#allocation2 + $0x8] sm:$0xff]
    %v147 = vld [vmem:[%s2] sm:$0xf]
    %v148 = vunpack.c.l.bf16 %v147
    %v150 = vsel %vm139, %v145, 0
    %v153 = vsel %vm139, %v146, 0
    %155 = vmatprep.subr.mxu0 0.0
    %156 = vmatpush1.msra.mxu0 0.0
    %157 = vmatprep.subr.mxu0 0.0
    %158 = vmatpush1.msra.mxu0 0.0
    %159 = vmatprep.subr.mxu0 0.0
    %160 = vmatpush1.msra.mxu0 0.0
    %161 = vmatprep.subr.mxu0 0.0
    %162 = vmatpush1.msra.mxu0 0.0
    %163 = vmatprep.subr.mxu0 0.0
    %164 = vmatpush1.msra.mxu0 0.0
    %165 = vmatprep.subr.mxu0 0.0
    %166 = vmatpush1.msra.mxu0 0.0
    %167 = vmatprep.subr.mxu0 0.0
    %168 = vmatpush1.msra.mxu0 0.0
    %169 = vmatprep.subr.mxu0 0.0
    %170 = vmatpush1.msra.mxu0 0.0
    %171 = vmatprep.subr.mxu0 0.0
    %172 = vmatpush1.msra.mxu0 0.0
    %173 = vmatprep.subr.mxu0 0.0
    %174 = vmatpush1.msra.mxu0 0.0
    %175 = vmatprep.subr.mxu0 0.0
    %176 = vmatpush1.msra.mxu0 0.0
    %177 = vmatprep.subr.mxu0 0.0
    %178 = vmatpush1.msra.mxu0 0.0
    %179 = vmatprep.subr.mxu0 0.0
    %180 = vmatpush1.msra.mxu0 0.0
    %181 = vmatprep.subr.mxu0 0.0
    %182 = vmatpush1.msra.mxu0 0.0
    %183 = vmatprep.subr.mxu0 0.0
    %184 = vmatpush1.msra.mxu0 0.0
    %185 = vmatprep.subr.mxu0 0.0
    %186 = vmatpush1.msra.mxu0 %v148
    %187 = vmatprep.subr.mxu0 0.0
    %188 = vmatpush2.msra.mxu0 0.0
    %189 = vmatprep.subr.mxu0 0.0
    %190 = vmatpush2.msra.mxu0 0.0
    %191 = vmatprep.subr.mxu0 0.0
    %192 = vmatpush2.msra.mxu0 0.0
    %193 = vmatprep.subr.mxu0 0.0
    %194 = vmatpush2.msra.mxu0 0.0
    %195 = vmatprep.subr.mxu0 0.0
    %196 = vmatpush2.msra.mxu0 0.0
    %197 = vmatprep.subr.mxu0 0.0
    %198 = vmatpush2.msra.mxu0 0.0
    %199 = vmatprep.subr.mxu0 0.0
    %200 = vmatpush2.msra.mxu0 0.0
    %201 = vmatprep.subr.mxu0 0.0
    %202 = vmatpush2.msra.mxu0 0.0
    %203 = vmatprep.subr.mxu0 0.0
    %204 = vmatpush2.msra.mxu0 0.0
    %205 = vmatprep.subr.mxu0 0.0
    %206 = vmatpush2.msra.mxu0 0.0
    %207 = vmatprep.subr.mxu0 0.0
    %208 = vmatpush2.msra.mxu0 0.0
    %209 = vmatprep.subr.mxu0 0.0
    %210 = vmatpush2.msra.mxu0 0.0
    %211 = vmatprep.subr.mxu0 0.0
    %212 = vmatpush2.msra.mxu0 0.0
    %213 = vmatprep.subr.mxu0 0.0
    %214 = vmatpush2.msra.mxu0 0.0
    %215 = vmatprep.subr.mxu0 0.0
    %216 = vmatpush2.msra.mxu0 0.0
    %217 = vmatprep.subr.mxu0 0.0
    %218 = vmatpush2.msra.mxu0 0.0
    %219 = vmatprep.mubr.f32.mxu0 0.0
    %220 = vmatmul.mubr.f32.gmra.mxu0 %v150
    %v221 = vpop.f32.mrf.mxu0
    %v222 = vadd.f32 0.0, %v221
    %v223 = vpop.f32.mrf.mxu0
    %224 = vmatprep.mubr.f32.mxu0 0.0
    %225 = vmatmul.mubr.f32.gmra.mxu0 %v153
    %v226 = vpop.f32.mrf.mxu0
    %v227 = vadd.f32 0.0, %v226
    %v228 = vpop.f32.mrf.mxu0
    %229 = vdwg.mxu0
    %v230 = vld [vmem:[%s3] sm:$0xff]
    %v231 = vld [vmem:[%s3 + $0x8] sm:$0xff]
    %v232 = vadd.f32 %v230, %v222
    %v233 = vadd.f32 %v231, %v227
    %vm234 = vcmask 261120
    %235 = vst.msk [vmem:[%s4] sm:$0xff] %vm234, %v232
    %236 = vst.msk [vmem:[%s4 + $0x8] sm:$0xff] %vm234, %v233
  $region25: #{cheb_gcn_forward.3} parent=0 // pred_fallthru
    _
  // Predicated region
  $region26: #{cheb_gcn_forward.3} parent=0 // pred_check
    _
  $region27: #{cheb_gcn_forward.3} parent=0 // pred_check_branch
    %238 = sbr.rel (0) target = $region29
  $region28: #{cheb_gcn_forward.3} parent=0 // pred_region
    _
  $region29: #{cheb_gcn_forward.3} parent=0 // pred_fallthru
    _
  // Predicated region
  $region30: #{cheb_gcn_forward.3} parent=0 // pred_check
    _
  $region31: #{cheb_gcn_forward.3} parent=0 // pred_check_branch
    %240 = sbr.rel (0) target = $region33
  $region32: #{cheb_gcn_forward.3} parent=0 // pred_region
    _
  $region33: #{cheb_gcn_forward.3} parent=0 // pred_fallthru
    _

</llo_original>
